<compile_context>
chip_gen: v5e
topology: v5e:2x2
jax: 0.10.0
libtpu: 0.0.40
codegen_flags: <defaults>
</compile_context>

<pallas_src>
import functools

import jax
import jax.numpy as jnp
from jax.experimental import pallas as pl
from jax.experimental.pallas import tpu as pltpu


def _silu(x):
    # x * sigmoid(x) == 0.5 * x * (tanh(x/2) + 1): one EUP transcendental, exact.
    half = jnp.asarray(0.5, x.dtype)
    one = jnp.asarray(1.0, x.dtype)
    return half * x * (jnp.tanh(half * x) + one)


def mlp_kernel(x_ref,
               w1_ref, b1_ref,
               w2_ref, b2_ref,
               w3_ref, b3_ref,
               w4t_ref, b4_ref,
               o_ref, *, act_dtype):
    f32 = jnp.float32
    x = x_ref[...].astype(f32)                                 # (1, tb)

    # Layer 1: Linear(1, 10) + SiLU.  fan_in == 1 -> pure VPU broadcast FMA.
    pre1 = w1_ref[...] * x + b1_ref[...]                       # (10, tb) f32
    h1 = _silu(pre1.astype(act_dtype))                         # (10, tb) act

    # Layer 2: Linear(10, 100) on the MXU (bf16 operands, f32 accumulate) + SiLU.
    pre2 = jnp.dot(w2_ref[...], h1.astype(jnp.bfloat16),
                   preferred_element_type=f32) + b2_ref[...]   # (100, tb) f32
    h2 = _silu(pre2.astype(act_dtype))                         # (100, tb) act

    # Layer 3: Linear(100, 10) on the MXU + ReLU (only 10 rows -> stay f32).
    pre3 = jnp.dot(w3_ref[...], h2.astype(jnp.bfloat16),
                   preferred_element_type=f32) + b3_ref[...]   # (10, tb) f32
    h3 = jnp.maximum(pre3, 0.0)

    # Layer 4: Linear(10, 1).  fan_out == 1 -> multiply + sublane reduction.
    out = jnp.sum(w4t_ref[...] * h3, axis=0, keepdims=True) + b4_ref[...]
    o_ref[...] = out.astype(o_ref.dtype)                       # (1, tb)


def _round_up(x, m):
    return ((x + m - 1) // m) * m


def _default_activation_dtype():
    """bf16 elementwise on v6e/v7x (bf16-capable VPU/EUP), f32 otherwise (v5e)."""
    try:
        kind = jax.devices()[0].device_kind.lower()
    except Exception:
        return jnp.float32
    if ("v6" in kind) or ("v7" in kind):
        return jnp.bfloat16
    return jnp.float32


def mlp_forward(x, params, *, tile_b=None, target_tile=16384,
                act_dtype=None, vmem_limit_bytes=48 * 1024 * 1024):
    """x: (N, 1) float32.  params: weights stored (out, in), biases (out, 1)."""
    N = x.shape[0]

    if act_dtype is None:
        act_dtype = _default_activation_dtype()

    if tile_b is None:
        # Big lane tiles amortize per-step pipeline overhead, but keep at least
        # 2 grid steps so v7x can shard the "parallel" axis across its 2 TCs.
        per_step = int(pl.cdiv(N, 2))
        tile_b = max(512, min(target_tile, _round_up(per_step, 512)))

    n_tiles = max(int(pl.cdiv(N, tile_b)), 1)
    n_pad = n_tiles * tile_b

    # Batch on the lane axis; zero-pad up to a tile multiple (padded lanes never
    # contaminate valid ones: all reductions are over the feature/sublane axis).
    xt = x.reshape(N, 1).T                                     # (1, N)
    if n_pad != N:
        xt = jnp.pad(xt, ((0, 0), (0, n_pad - N)))

    w1, b1 = params["w1"], params["b1"]                        # (10,1),   (10,1)
    w2, b2 = params["w2"].astype(jnp.bfloat16), params["b2"]   # (100,10), (100,1)
    w3, b3 = params["w3"].astype(jnp.bfloat16), params["b3"]   # (10,100), (10,1)
    w4t = params["w4"].T                                       # (10,1)
    b4 = params["b4"]                                          # (1,1)

    def resident(arr):
        # Whole array, same block index every grid step -> stays VMEM-resident.
        return pl.BlockSpec(arr.shape, lambda i: (0, 0))

    kernel = functools.partial(mlp_kernel, act_dtype=act_dtype)

    out_t = pl.pallas_call(
        kernel,
        out_shape=jax.ShapeDtypeStruct((1, n_pad), x.dtype),
        grid_spec=pltpu.PrefetchScalarGridSpec(
            num_scalar_prefetch=0,
            grid=(n_tiles,),
            in_specs=[
                pl.BlockSpec((1, tile_b), lambda i: (0, i)),   # lane-dense x tile
                resident(w1), resident(b1),
                resident(w2), resident(b2),
                resident(w3), resident(b3),
                resident(w4t), resident(b4),
            ],
            out_specs=pl.BlockSpec((1, tile_b), lambda i: (0, i)),
        ),
        compiler_params=pltpu.CompilerParams(
            dimension_semantics=("parallel",),
            vmem_limit_bytes=vmem_limit_bytes),
    )(xt, w1, b1, w2, b2, w3, b3, w4t, b4)

    return out_t[:, :N].T                                      # (N, 1)


def init_params(key):
    """PyTorch-style uniform init; weights stored (out, in), biases (out, 1)."""
    dims = [(1, 10), (10, 100), (100, 10), (10, 1)]            # (fan_in, fan_out)
    params = {}
    for idx, (fan_in, fan_out) in enumerate(dims, start=1):
        key, kw, kb = jax.random.split(key, 3)
        bound = 1.0 / (fan_in ** 0.5)
        params[f"w{idx}"] = jax.random.uniform(
            kw, (fan_out, fan_in), jnp.float32, minval=-bound, maxval=bound)
        params[f"b{idx}"] = jax.random.uniform(
            kb, (fan_out, 1), jnp.float32, minval=-bound, maxval=bound)
    return params


def mlp_reference(x, params):
    def silu(v):
        return v * jax.nn.sigmoid(v)
    h = x                                                      # (N, 1)
    h = silu(h @ params["w1"].T + params["b1"].T)
    h = silu(h @ params["w2"].T + params["b2"].T)
    h = jnp.maximum(h @ params["w3"].T + params["b3"].T, 0.0)
    h = h @ params["w4"].T + params["b4"].T
    return h


if __name__ == "__main__":
    key = jax.random.PRNGKey(0)
    key, kx = jax.random.split(key)

    N = 1000                       # not a tile multiple: exercises pad + slice
    x = jax.random.normal(kx, (N, 1), jnp.float32)

    params = init_params(key)

    out = jax.block_until_ready(mlp_forward(x, params))
    ref = mlp_reference(x, params)

    assert out.shape == (N, 1)
    # bf16 MXU operands (and bf16 elementwise on v6e/v7x) with f32 accumulation:
    # error stays well inside this tolerance for K <= 100.
    assert jnp.allclose(out, ref, atol=3e-2, rtol=3e-2), (
        f"mismatch vs reference, max abs err = {jnp.max(jnp.abs(out - ref))}")

    print("KERNEL_OK")
</pallas_src>

<mosaic_0001>
module attributes {stable_mosaic.version = 11 : i64} {
  func.func @mlp_kernel(%arg0: i32, %arg1: memref<1x512xf32, #tpu.memory_space<vmem>>, %arg2: memref<10x1xf32, #tpu.memory_space<vmem>>, %arg3: memref<10x1xf32, #tpu.memory_space<vmem>>, %arg4: memref<100x10xbf16, #tpu.memory_space<vmem>>, %arg5: memref<100x1xf32, #tpu.memory_space<vmem>>, %arg6: memref<10x100xbf16, #tpu.memory_space<vmem>>, %arg7: memref<10x1xf32, #tpu.memory_space<vmem>>, %arg8: memref<10x1xf32, #tpu.memory_space<vmem>>, %arg9: memref<1x1xf32, #tpu.memory_space<vmem>>, %arg10: memref<1x512xf32, #tpu.memory_space<vmem>>) attributes {dimension_semantics = [#tpu.dimension_semantics<parallel>], iteration_bounds = array<i64: 2>, scalar_prefetch = 0 : i64, scratch_operands = 0 : i64, tpu.core_type = #tpu.core_type<tc>, window_params = [{transform_indices = @transform_0, window_bounds = array<i64: 1, 512>}, {pipeline_mode = #tpu.pipeline_mode<synchronous>, transform_indices = @transform_1, window_bounds = array<i64: 10, 1>}, {pipeline_mode = #tpu.pipeline_mode<synchronous>, transform_indices = @transform_2, window_bounds = array<i64: 10, 1>}, {pipeline_mode = #tpu.pipeline_mode<synchronous>, transform_indices = @transform_3, window_bounds = array<i64: 100, 10>}, {pipeline_mode = #tpu.pipeline_mode<synchronous>, transform_indices = @transform_4, window_bounds = array<i64: 100, 1>}, {pipeline_mode = #tpu.pipeline_mode<synchronous>, transform_indices = @transform_5, window_bounds = array<i64: 10, 100>}, {pipeline_mode = #tpu.pipeline_mode<synchronous>, transform_indices = @transform_6, window_bounds = array<i64: 10, 1>}, {pipeline_mode = #tpu.pipeline_mode<synchronous>, transform_indices = @transform_7, window_bounds = array<i64: 10, 1>}, {pipeline_mode = #tpu.pipeline_mode<synchronous>, transform_indices = @transform_8, window_bounds = array<i64: 1, 1>}, {transform_indices = @transform_9, window_bounds = array<i64: 1, 512>}]} {
    %c0 = arith.constant 0 : index
    %c0_0 = arith.constant 0 : index
    %0 = vector.load %arg1[%c0, %c0_0] : memref<1x512xf32, #tpu.memory_space<vmem>>, vector<1x512xf32>
    %c0_1 = arith.constant 0 : index
    %c0_2 = arith.constant 0 : index
    %1 = vector.load %arg2[%c0_1, %c0_2] : memref<10x1xf32, #tpu.memory_space<vmem>>, vector<10x1xf32>
    %2 = vector.broadcast %1 : vector<10x1xf32> to vector<10x512xf32>
    %3 = vector.broadcast %0 : vector<1x512xf32> to vector<10x512xf32>
    %4 = arith.mulf %2, %3 : vector<10x512xf32>
    %c0_3 = arith.constant 0 : index
    %c0_4 = arith.constant 0 : index
    %5 = vector.load %arg3[%c0_3, %c0_4] : memref<10x1xf32, #tpu.memory_space<vmem>>, vector<10x1xf32>
    %6 = vector.broadcast %5 : vector<10x1xf32> to vector<10x512xf32>
    %7 = arith.addf %4, %6 : vector<10x512xf32>
    %cst = arith.constant 5.000000e-01 : f32
    %8 = vector.broadcast %cst : f32 to vector<10x512xf32>
    %9 = arith.mulf %8, %7 : vector<10x512xf32>
    %cst_5 = arith.constant 5.000000e-01 : f32
    %10 = vector.broadcast %cst_5 : f32 to vector<10x512xf32>
    %11 = arith.mulf %10, %7 : vector<10x512xf32>
    %12 = math.tanh %11 : vector<10x512xf32>
    %cst_6 = arith.constant 1.000000e+00 : f32
    %13 = vector.broadcast %cst_6 : f32 to vector<10x512xf32>
    %14 = arith.addf %12, %13 : vector<10x512xf32>
    %15 = arith.mulf %9, %14 : vector<10x512xf32>
    %c0_7 = arith.constant 0 : index
    %c0_8 = arith.constant 0 : index
    %16 = vector.load %arg4[%c0_7, %c0_8] : memref<100x10xbf16, #tpu.memory_space<vmem>>, vector<100x10xbf16>
    %17 = arith.truncf %15 : vector<10x512xf32> to vector<10x512xbf16>
    %cst_9 = arith.constant dense<0.000000e+00> : vector<100x512xf32>
    %18 = tpu.matmul %16, %17, %cst_9 {dimension_numbers = #tpu.dot_dimension_numbers<[1], [0], [0], [1], [0, 0, 1, 1], [], []>} : vector<100x10xbf16>, vector<10x512xbf16>, vector<100x512xf32> -> vector<100x512xf32>
    %c0_10 = arith.constant 0 : index
    %c0_11 = arith.constant 0 : index
    %19 = vector.load %arg5[%c0_10, %c0_11] : memref<100x1xf32, #tpu.memory_space<vmem>>, vector<100x1xf32>
    %20 = vector.broadcast %19 : vector<100x1xf32> to vector<100x512xf32>
    %21 = arith.addf %18, %20 : vector<100x512xf32>
    %cst_12 = arith.constant 5.000000e-01 : f32
    %22 = vector.broadcast %cst_12 : f32 to vector<100x512xf32>
    %23 = arith.mulf %22, %21 : vector<100x512xf32>
    %cst_13 = arith.constant 5.000000e-01 : f32
    %24 = vector.broadcast %cst_13 : f32 to vector<100x512xf32>
    %25 = arith.mulf %24, %21 : vector<100x512xf32>
    %26 = math.tanh %25 : vector<100x512xf32>
    %cst_14 = arith.constant 1.000000e+00 : f32
    %27 = vector.broadcast %cst_14 : f32 to vector<100x512xf32>
    %28 = arith.addf %26, %27 : vector<100x512xf32>
    %29 = arith.mulf %23, %28 : vector<100x512xf32>
    %c0_15 = arith.constant 0 : index
    %c0_16 = arith.constant 0 : index
    %30 = vector.load %arg6[%c0_15, %c0_16] : memref<10x100xbf16, #tpu.memory_space<vmem>>, vector<10x100xbf16>
    %31 = arith.truncf %29 : vector<100x512xf32> to vector<100x512xbf16>
    %cst_17 = arith.constant dense<0.000000e+00> : vector<10x512xf32>
    %32 = tpu.matmul %30, %31, %cst_17 {dimension_numbers = #tpu.dot_dimension_numbers<[1], [0], [0], [1], [0, 0, 1, 1], [], []>} : vector<10x100xbf16>, vector<100x512xbf16>, vector<10x512xf32> -> vector<10x512xf32>
    %c0_18 = arith.constant 0 : index
    %c0_19 = arith.constant 0 : index
    %33 = vector.load %arg7[%c0_18, %c0_19] : memref<10x1xf32, #tpu.memory_space<vmem>>, vector<10x1xf32>
    %34 = vector.broadcast %33 : vector<10x1xf32> to vector<10x512xf32>
    %35 = arith.addf %32, %34 : vector<10x512xf32>
    %cst_20 = arith.constant 0.000000e+00 : f32
    %36 = vector.broadcast %cst_20 : f32 to vector<10x512xf32>
    %37 = arith.maximumf %35, %36 : vector<10x512xf32>
    %c0_21 = arith.constant 0 : index
    %c0_22 = arith.constant 0 : index
    %38 = vector.load %arg8[%c0_21, %c0_22] : memref<10x1xf32, #tpu.memory_space<vmem>>, vector<10x1xf32>
    %39 = vector.broadcast %38 : vector<10x1xf32> to vector<10x512xf32>
    %40 = arith.mulf %39, %37 : vector<10x512xf32>
    %cst_23 = arith.constant dense<0.000000e+00> : vector<512xf32>
    %41 = vector.multi_reduction <add>, %40, %cst_23 [0] : vector<10x512xf32> to vector<512xf32>
    %42 = vector.shape_cast %41 : vector<512xf32> to vector<1x512xf32>
    %c0_24 = arith.constant 0 : index
    %c0_25 = arith.constant 0 : index
    %43 = vector.load %arg9[%c0_24, %c0_25] : memref<1x1xf32, #tpu.memory_space<vmem>>, vector<1x1xf32>
    %44 = vector.broadcast %43 : vector<1x1xf32> to vector<1x512xf32>
    %45 = arith.addf %42, %44 : vector<1x512xf32>
    %c0_26 = arith.constant 0 : index
    %c0_27 = arith.constant 0 : index
    %46 = vector.load %arg10[%c0_26, %c0_27] : memref<1x512xf32, #tpu.memory_space<vmem>>, vector<1x512xf32>
    tpu.vector_store %arg10[%c0_26, %c0_27], %45 {strides = array<i32>} : memref<1x512xf32, #tpu.memory_space<vmem>>, vector<1x512xf32>,
    return
  }
  func.func @transform_0(%arg0: i32) -> (i32, i32) {
    %c0_i32 = arith.constant 0 : i32
    %c0_i32_0 = arith.constant 0 : i32
    return %c0_i32, %arg0 : i32, i32
  }
  func.func @transform_1(%arg0: i32) -> (i32, i32) {
    %c0_i32 = arith.constant 0 : i32
    %c0_i32_0 = arith.constant 0 : i32
    %c0_i32_1 = arith.constant 0 : i32
    return %c0_i32, %c0_i32_0 : i32, i32
  }
  func.func @transform_2(%arg0: i32) -> (i32, i32) {
    %c0_i32 = arith.constant 0 : i32
    %c0_i32_0 = arith.constant 0 : i32
    %c0_i32_1 = arith.constant 0 : i32
    return %c0_i32, %c0_i32_0 : i32, i32
  }
  func.func @transform_3(%arg0: i32) -> (i32, i32) {
    %c0_i32 = arith.constant 0 : i32
    %c0_i32_0 = arith.constant 0 : i32
    %c0_i32_1 = arith.constant 0 : i32
    return %c0_i32, %c0_i32_0 : i32, i32
  }
  func.func @transform_4(%arg0: i32) -> (i32, i32) {
    %c0_i32 = arith.constant 0 : i32
    %c0_i32_0 = arith.constant 0 : i32
    %c0_i32_1 = arith.constant 0 : i32
    return %c0_i32, %c0_i32_0 : i32, i32
  }
  func.func @transform_5(%arg0: i32) -> (i32, i32) {
    %c0_i32 = arith.constant 0 : i32
    %c0_i32_0 = arith.constant 0 : i32
    %c0_i32_1 = arith.constant 0 : i32
    return %c0_i32, %c0_i32_0 : i32, i32
  }
  func.func @transform_6(%arg0: i32) -> (i32, i32) {
    %c0_i32 = arith.constant 0 : i32
    %c0_i32_0 = arith.constant 0 : i32
    %c0_i32_1 = arith.constant 0 : i32
    return %c0_i32, %c0_i32_0 : i32, i32
  }
  func.func @transform_7(%arg0: i32) -> (i32, i32) {
    %c0_i32 = arith.constant 0 : i32
    %c0_i32_0 = arith.constant 0 : i32
    %c0_i32_1 = arith.constant 0 : i32
    return %c0_i32, %c0_i32_0 : i32, i32
  }
  func.func @transform_8(%arg0: i32) -> (i32, i32) {
    %c0_i32 = arith.constant 0 : i32
    %c0_i32_0 = arith.constant 0 : i32
    %c0_i32_1 = arith.constant 0 : i32
    return %c0_i32, %c0_i32_0 : i32, i32
  }
  func.func @transform_9(%arg0: i32) -> (i32, i32) {
    %c0_i32 = arith.constant 0 : i32
    %c0_i32_0 = arith.constant 0 : i32
    return %c0_i32, %arg0 : i32, i32
  }
}

</mosaic_0001>

<llo_original>
// kernel: tpu_custom_call.1
$region0: #{tpu_custom_call.1}
  #allocation0 [shape = 'u32[]', space=smem, size = 0x4, offset = 0x4, fixed_abs, tag = 'smem constant byte address 0x4 - core index']
  #allocation1 [shape = 'u32[72,128]{1,0:T(1,128)}', space=vmem, size = 0x9000, scoped, tag = 'internal scratch']
  #allocation2 [shape = 'f32[1,1]{1,0:T(1,128)S(1)}', space=vmem, size = 0x200, scoped, tag = 'scoped memory for tpu_custom_call.1']
  %s0 = inlined_call_operand.vmem [shape: f32[1,1024], index: 0, kind: input, shape index: {}]
  %s1 = inlined_call_operand.vmem [shape: f32[10,1], index: 1, kind: input, shape index: {}]
  %s2 = inlined_call_operand.vmem [shape: f32[10,1], index: 2, kind: input, shape index: {}]
  %s3 = inlined_call_operand.vmem [shape: bf16[100,10], index: 3, kind: input, shape index: {}]
  %s4 = inlined_call_operand.vmem [shape: f32[100,1], index: 4, kind: input, shape index: {}]
  %s5 = inlined_call_operand.vmem [shape: bf16[10,100], index: 5, kind: input, shape index: {}]
  %s6 = inlined_call_operand.vmem [shape: f32[10,1], index: 6, kind: input, shape index: {}]
  %s7 = inlined_call_operand.vmem [shape: f32[10,1], index: 7, kind: input, shape index: {}]
  %s8 = inlined_call_operand.<no memory space> [shape: f32[1,1], index: 8, kind: input, shape index: {}]
  %s9 = inlined_call_operand.hbm [shape: f32[1,1024], index: 9, kind: output, shape index: {}]
  %s10 = sld [smem:[#allocation0]]
  $region69: #{tpu_custom_call.1} parent=0
    _
  %s12 = ssub.s32 1, %s10
  %s13 = scalar_select 0, %s12, %s10
  %v14 = vstv %s8
  %15 = vst [vmem:[#allocation2] sm:$0x1] %v14
  $region1: #{tpu_custom_call.1} parent=0
    #allocation3 [shape = 'u8[4096]{0}', space=vmem, size = 0x1000, scoped, tag = 'output window, operand 0']
    #allocation4 [shape = 's32[2]{0}', space=sflag, size = 0x8, scoped, tag = 'scoped memory for tpu_custom_call.1']
    %16 = vsyncpa [#allocation4], 0
    %s17 = scalar_lea.sflag [#allocation4], 1
    %18 = vsyncpa %s17, 0
    loop: start=0, step=1, limit=4
    $region2: #{tpu_custom_call.1} parent=1 // loop_pre_header
      _
    $region3: #{tpu_custom_call.1} parent=1 // loop_header
      %s20 = sphi 0, %s24
      %p21 = scmp.ge.s32.totalorder %s20, 4
      %s30 = sphi 0, %s32
      %s33 = sphi 0, %s30
      %s34 = sphi 0, %s33
      %s50 = sphi 0, %s34
      %s54 = sphi 0, %s54
      %s56 = sphi 0, %s54
      %s57 = sphi 0, %s56
      %s71 = sphi 0, %s57
      %s75 = sphi 0, %s75
      %s77 = sphi 0, %s75
      %s78 = sphi 0, %s77
      %s92 = sphi 0, %s78
      %s96 = sphi 0, %s96
      %s98 = sphi 0, %s96
      %s99 = sphi 0, %s98
      %s113 = sphi 0, %s99
      %s117 = sphi 0, %s117
      %s119 = sphi 0, %s117
      %s120 = sphi 0, %s119
      %s134 = sphi 0, %s120
      %s138 = sphi 0, %s138
      %s140 = sphi 0, %s138
      %s141 = sphi 0, %s140
      %s155 = sphi 0, %s141
      %s159 = sphi 0, %s159
      %s161 = sphi 0, %s159
      %s162 = sphi 0, %s161
      %s176 = sphi 0, %s162
      %s180 = sphi 0, %s180
      %s182 = sphi 0, %s180
      %s183 = sphi 0, %s182
      %s197 = sphi 0, %s183
      %s201 = sphi 0, %s201
      %s203 = sphi 0, %s201
      %s204 = sphi 0, %s203
      %s218 = sphi 0, %s204
      %s224 = sphi 0, %s226
      %s227 = sphi 0, %s224
      %s228 = sphi 0, %s227
      %s244 = sphi 0, %s228
    $region4: #{tpu_custom_call.1} parent=1 // loop_header_branch
      %23 = sbr.rel (%p21) target = $region8
    $region5: #{tpu_custom_call.1} parent=1 // loop_body
      %s25 = ssub.s32 %s20, 1
      %s26 = ssub.s32 %s20, 2
      %s27 = sadd.s32 %s20, 1
      %s28 = ssub.s32 %s20, %s27
      %p29 = scmp.eq.s32.totalorder %s28, 0
      %s31 = sadd.s32 %s30, 1
      %s32 = scalar_select %p29, %s30, %s31
      %p35 = pneg %p29
      %p36 = scmp.eq.s32.totalorder %s20, 1
      %p37 = por %p35, %p36
      %p38 = scmp.ne.s32.totalorder %s30, %s33
      %p39 = scmp.eq.s32.totalorder %s20, 0
      %p40 = por %p38, %p39
      %p41 = scmp.ne.s32.totalorder %s30, %s33
      %p42 = scmp.eq.s32.totalorder %s25, 1
      %p43 = por %p41, %p42
      %p44 = scmp.ne.s32.totalorder %s33, %s34
      %p45 = scmp.eq.s32.totalorder %s25, 0
      %p46 = por %p44, %p45
      %p47 = scmp.ne.s32.totalorder %s33, %s34
      %p48 = scmp.eq.s32.totalorder %s26, 1
      %p49 = por %p47, %p48
      %p51 = scmp.ne.s32.totalorder %s34, %s50
      %p52 = scmp.eq.s32.totalorder %s26, 0
      %p53 = por %p51, %p52
      %s55 = sadd.s32 %s54, 1
      %p58 = scmp.eq.s32.totalorder %s20, 1
      %p59 = scmp.ne.s32.totalorder %s54, %s56
      %p60 = scmp.eq.s32.totalorder %s20, 0
      %p61 = por %p59, %p60
      %p62 = scmp.ne.s32.totalorder %s54, %s56
      %p63 = scmp.eq.s32.totalorder %s25, 1
      %p64 = por %p62, %p63
      %p65 = scmp.ne.s32.totalorder %s56, %s57
      %p66 = scmp.eq.s32.totalorder %s25, 0
      %p67 = por %p65, %p66
      %p68 = scmp.ne.s32.totalorder %s56, %s57
      %p69 = scmp.eq.s32.totalorder %s26, 1
      %p70 = por %p68, %p69
      %p72 = scmp.ne.s32.totalorder %s57, %s71
      %p73 = scmp.eq.s32.totalorder %s26, 0
      %p74 = por %p72, %p73
      %s76 = sadd.s32 %s75, 1
      %p79 = scmp.eq.s32.totalorder %s20, 1
      %p80 = scmp.ne.s32.totalorder %s75, %s77
      %p81 = scmp.eq.s32.totalorder %s20, 0
      %p82 = por %p80, %p81
      %p83 = scmp.ne.s32.totalorder %s75, %s77
      %p84 = scmp.eq.s32.totalorder %s25, 1
      %p85 = por %p83, %p84
      %p86 = scmp.ne.s32.totalorder %s77, %s78
      %p87 = scmp.eq.s32.totalorder %s25, 0
      %p88 = por %p86, %p87
      %p89 = scmp.ne.s32.totalorder %s77, %s78
      %p90 = scmp.eq.s32.totalorder %s26, 1
      %p91 = por %p89, %p90
      %p93 = scmp.ne.s32.totalorder %s78, %s92
      %p94 = scmp.eq.s32.totalorder %s26, 0
      %p95 = por %p93, %p94
      %s97 = sadd.s32 %s96, 1
      %p100 = scmp.eq.s32.totalorder %s20, 1
      %p101 = scmp.ne.s32.totalorder %s96, %s98
      %p102 = scmp.eq.s32.totalorder %s20, 0
      %p103 = por %p101, %p102
      %p104 = scmp.ne.s32.totalorder %s96, %s98
      %p105 = scmp.eq.s32.totalorder %s25, 1
      %p106 = por %p104, %p105
      %p107 = scmp.ne.s32.totalorder %s98, %s99
      %p108 = scmp.eq.s32.totalorder %s25, 0
      %p109 = por %p107, %p108
      %p110 = scmp.ne.s32.totalorder %s98, %s99
      %p111 = scmp.eq.s32.totalorder %s26, 1
      %p112 = por %p110, %p111
      %p114 = scmp.ne.s32.totalorder %s99, %s113
      %p115 = scmp.eq.s32.totalorder %s26, 0
      %p116 = por %p114, %p115
      %s118 = sadd.s32 %s117, 1
      %p121 = scmp.eq.s32.totalorder %s20, 1
      %p122 = scmp.ne.s32.totalorder %s117, %s119
      %p123 = scmp.eq.s32.totalorder %s20, 0
      %p124 = por %p122, %p123
      %p125 = scmp.ne.s32.totalorder %s117, %s119
      %p126 = scmp.eq.s32.totalorder %s25, 1
      %p127 = por %p125, %p126
      %p128 = scmp.ne.s32.totalorder %s119, %s120
      %p129 = scmp.eq.s32.totalorder %s25, 0
      %p130 = por %p128, %p129
      %p131 = scmp.ne.s32.totalorder %s119, %s120
      %p132 = scmp.eq.s32.totalorder %s26, 1
      %p133 = por %p131, %p132
      %p135 = scmp.ne.s32.totalorder %s120, %s134
      %p136 = scmp.eq.s32.totalorder %s26, 0
      %p137 = por %p135, %p136
      %s139 = sadd.s32 %s138, 1
      %p142 = scmp.eq.s32.totalorder %s20, 1
      %p143 = scmp.ne.s32.totalorder %s138, %s140
      %p144 = scmp.eq.s32.totalorder %s20, 0
      %p145 = por %p143, %p144
      %p146 = scmp.ne.s32.totalorder %s138, %s140
      %p147 = scmp.eq.s32.totalorder %s25, 1
      %p148 = por %p146, %p147
      %p149 = scmp.ne.s32.totalorder %s140, %s141
      %p150 = scmp.eq.s32.totalorder %s25, 0
      %p151 = por %p149, %p150
      %p152 = scmp.ne.s32.totalorder %s140, %s141
      %p153 = scmp.eq.s32.totalorder %s26, 1
      %p154 = por %p152, %p153
      %p156 = scmp.ne.s32.totalorder %s141, %s155
      %p157 = scmp.eq.s32.totalorder %s26, 0
      %p158 = por %p156, %p157
      %s160 = sadd.s32 %s159, 1
      %p163 = scmp.eq.s32.totalorder %s20, 1
      %p164 = scmp.ne.s32.totalorder %s159, %s161
      %p165 = scmp.eq.s32.totalorder %s20, 0
      %p166 = por %p164, %p165
      %p167 = scmp.ne.s32.totalorder %s159, %s161
      %p168 = scmp.eq.s32.totalorder %s25, 1
      %p169 = por %p167, %p168
      %p170 = scmp.ne.s32.totalorder %s161, %s162
      %p171 = scmp.eq.s32.totalorder %s25, 0
      %p172 = por %p170, %p171
      %p173 = scmp.ne.s32.totalorder %s161, %s162
      %p174 = scmp.eq.s32.totalorder %s26, 1
      %p175 = por %p173, %p174
      %p177 = scmp.ne.s32.totalorder %s162, %s176
      %p178 = scmp.eq.s32.totalorder %s26, 0
      %p179 = por %p177, %p178
      %s181 = sadd.s32 %s180, 1
      %p184 = scmp.eq.s32.totalorder %s20, 1
      %p185 = scmp.ne.s32.totalorder %s180, %s182
      %p186 = scmp.eq.s32.totalorder %s20, 0
      %p187 = por %p185, %p186
      %p188 = scmp.ne.s32.totalorder %s180, %s182
      %p189 = scmp.eq.s32.totalorder %s25, 1
      %p190 = por %p188, %p189
      %p191 = scmp.ne.s32.totalorder %s182, %s183
      %p192 = scmp.eq.s32.totalorder %s25, 0
      %p193 = por %p191, %p192
      %p194 = scmp.ne.s32.totalorder %s182, %s183
      %p195 = scmp.eq.s32.totalorder %s26, 1
      %p196 = por %p194, %p195
      %p198 = scmp.ne.s32.totalorder %s183, %s197
      %p199 = scmp.eq.s32.totalorder %s26, 0
      %p200 = por %p198, %p199
      %s202 = sadd.s32 %s201, 1
      %p205 = scmp.eq.s32.totalorder %s20, 1
      %p206 = scmp.ne.s32.totalorder %s201, %s203
      %p207 = scmp.eq.s32.totalorder %s20, 0
      %p208 = por %p206, %p207
      %p209 = scmp.ne.s32.totalorder %s201, %s203
      %p210 = scmp.eq.s32.totalorder %s25, 1
      %p211 = por %p209, %p210
      %p212 = scmp.ne.s32.totalorder %s203, %s204
      %p213 = scmp.eq.s32.totalorder %s25, 0
      %p214 = por %p212, %p213
      %p215 = scmp.ne.s32.totalorder %s203, %s204
      %p216 = scmp.eq.s32.totalorder %s26, 1
      %p217 = por %p215, %p216
      %p219 = scmp.ne.s32.totalorder %s204, %s218
      %p220 = scmp.eq.s32.totalorder %s26, 0
      %p221 = por %p219, %p220
      %s222 = ssub.s32 %s20, %s27
      %p223 = scmp.eq.s32.totalorder %s222, 0
      %s225 = sadd.s32 %s224, 1
      %s226 = scalar_select %p223, %s224, %s225
      %p229 = pneg %p223
      %p230 = scmp.eq.s32.totalorder %s20, 1
      %p231 = por %p229, %p230
      %p232 = scmp.ne.s32.totalorder %s224, %s227
      %p233 = scmp.eq.s32.totalorder %s20, 0
      %p234 = por %p232, %p233
      %p235 = scmp.ne.s32.totalorder %s224, %s227
      %p236 = scmp.eq.s32.totalorder %s25, 1
      %p237 = por %p235, %p236
      %p238 = scmp.ne.s32.totalorder %s227, %s228
      %p239 = scmp.eq.s32.totalorder %s25, 0
      %p240 = por %p238, %p239
      %p241 = scmp.ne.s32.totalorder %s227, %s228
      %p242 = scmp.eq.s32.totalorder %s26, 1
      %p243 = por %p241, %p242
      %p245 = scmp.ne.s32.totalorder %s228, %s244
      %p246 = scmp.eq.s32.totalorder %s26, 0
      %p247 = por %p245, %p246
      %p248 = scmp.le.s32.totalorder 1, %s20
      %p249 = scmp.lt.s32.totalorder %s20, 3
      %p250 = pnand %p248, %p249
      %p251 = pneg %p250
      // Predicated region
      $region9: #{tpu_custom_call.1} parent=5 // pred_check
        _
      $region10: #{tpu_custom_call.1} parent=5 // pred_check_branch
        %253 = sbr.rel (%p250) target = $region12
      $region11: #{tpu_custom_call.1} parent=5 // pred_region
        %s254 = ssub.s32 %s20, 1
        // Predicated region
        $region13: #{tpu_custom_call.1} parent=11 // pred_check
          %p255 = pneg %p67
        $region14: #{tpu_custom_call.1} parent=11 // pred_check_branch
          %257 = sbr.rel (%p255) target = $region16
        $region15: #{tpu_custom_call.1} parent=11 // pred_region
          _
        $region16: #{tpu_custom_call.1} parent=11 // pred_fallthru
          _
        // Predicated region
        $region17: #{tpu_custom_call.1} parent=11 // pred_check
          %p258 = pneg %p88
        $region18: #{tpu_custom_call.1} parent=11 // pred_check_branch
          %260 = sbr.rel (%p258) target = $region20
        $region19: #{tpu_custom_call.1} parent=11 // pred_region
          _
        $region20: #{tpu_custom_call.1} parent=11 // pred_fallthru
          _
        // Predicated region
        $region21: #{tpu_custom_call.1} parent=11 // pred_check
          %p261 = pneg %p109
        $region22: #{tpu_custom_call.1} parent=11 // pred_check_branch
          %263 = sbr.rel (%p261) target = $region24
        $region23: #{tpu_custom_call.1} parent=11 // pred_region
          _
        $region24: #{tpu_custom_call.1} parent=11 // pred_fallthru
          _
        // Predicated region
        $region25: #{tpu_custom_call.1} parent=11 // pred_check
          %p264 = pneg %p130
        $region26: #{tpu_custom_call.1} parent=11 // pred_check_branch
          %266 = sbr.rel (%p264) target = $region28
        $region27: #{tpu_custom_call.1} parent=11 // pred_region
          _
        $region28: #{tpu_custom_call.1} parent=11 // pred_fallthru
          _
        // Predicated region
        $region29: #{tpu_custom_call.1} parent=11 // pred_check
          %p267 = pneg %p151
        $region30: #{tpu_custom_call.1} parent=11 // pred_check_branch
          %269 = sbr.rel (%p267) target = $region32
        $region31: #{tpu_custom_call.1} parent=11 // pred_region
          _
        $region32: #{tpu_custom_call.1} parent=11 // pred_fallthru
          _
        // Predicated region
        $region33: #{tpu_custom_call.1} parent=11 // pred_check
          %p270 = pneg %p172
        $region34: #{tpu_custom_call.1} parent=11 // pred_check_branch
          %272 = sbr.rel (%p270) target = $region36
        $region35: #{tpu_custom_call.1} parent=11 // pred_region
          _
        $region36: #{tpu_custom_call.1} parent=11 // pred_fallthru
          _
        // Predicated region
        $region37: #{tpu_custom_call.1} parent=11 // pred_check
          %p273 = pneg %p193
        $region38: #{tpu_custom_call.1} parent=11 // pred_check_branch
          %275 = sbr.rel (%p273) target = $region40
        $region39: #{tpu_custom_call.1} parent=11 // pred_region
          _
        $region40: #{tpu_custom_call.1} parent=11 // pred_fallthru
          _
        // Predicated region
        $region41: #{tpu_custom_call.1} parent=11 // pred_check
          %p276 = pneg %p214
        $region42: #{tpu_custom_call.1} parent=11 // pred_check_branch
          %278 = sbr.rel (%p276) target = $region44
        $region43: #{tpu_custom_call.1} parent=11 // pred_region
          _
        $region44: #{tpu_custom_call.1} parent=11 // pred_fallthru
          _
      $region12: #{tpu_custom_call.1} parent=5 // pred_fallthru
        _
      %p279 = scmp.lt.s32.totalorder %s20, 2
      // Predicated region
      $region45: #{tpu_custom_call.1} parent=5 // pred_check
        %p280 = pneg %p279
      $region46: #{tpu_custom_call.1} parent=5 // pred_check_branch
        %282 = sbr.rel (%p280) target = $region48
      $region47: #{tpu_custom_call.1} parent=5 // pred_region
        // Predicated region
        $region49: #{tpu_custom_call.1} parent=47 // pred_check
          %p283 = pneg %p40
        $region50: #{tpu_custom_call.1} parent=47 // pred_check_branch
          %285 = sbr.rel (%p283) target = $region52
        $region51: #{tpu_custom_call.1} parent=47 // pred_region
          %s286 = smul.u32 4, %s20
          %p287 = scmp.lt.s32.totalorder %s286, 7
          %s288 = scalar_select %p287, %s286, 7
          %s289 = scalar_lea.vmem %s0, %s288
          %s290 = smul.u32 4, %s20
        $region52: #{tpu_custom_call.1} parent=47 // pred_fallthru
          _
      $region48: #{tpu_custom_call.1} parent=5 // pred_fallthru
        _
      %p291 = scmp.le.s32.totalorder 1, %s20
      %p292 = scmp.lt.s32.totalorder %s20, 3
      %p293 = pnand %p291, %p292
      %p294 = pneg %p293
      // Predicated region
      $region53: #{tpu_custom_call.1} parent=5 // pred_check
        _
      $region54: #{tpu_custom_call.1} parent=5 // pred_check_branch
        %296 = sbr.rel (%p293) target = $region56
      $region55: #{tpu_custom_call.1} parent=5 // pred_region
        %s297 = ssub.s32 %s20, 1
        %s298 = smul.u32 4, %s25
        %p299 = scmp.lt.s32.totalorder %s298, 7
        %s300 = scalar_select %p299, %s298, 7
        %s301 = scalar_lea.vmem %s0, %s300
        %p302 = pneg %p46
        %p303 = pneg %p43
        %p304 = pneg %p67
        %p305 = pneg %p64
        %p306 = pneg %p88
        %p307 = pneg %p85
        %p308 = pneg %p109
        %p309 = pneg %p106
        %p310 = pneg %p130
        %p311 = pneg %p127
        %p312 = pneg %p151
        %p313 = pneg %p148
        %p314 = pneg %p172
        %p315 = pneg %p169
        %p316 = pneg %p193
        %p317 = pneg %p190
        %p318 = pneg %p214
        %p319 = pneg %p211
        %p320 = pneg %p240
        %p321 = pneg %p237
        %s322 = sand.u32 %s227, 1
        %s323 = scalar_lea.sflag [#allocation4], %s322
        %s324 = sand.u32 %s227, 1
        %s325 = smul.addr %s324, 4
        %s326 = scalar_lea.vmem [#allocation3], %s325
        %s327 = smul.u32 4, %s25
        %p328 = scmp.lt.s32.totalorder %s327, 7
        %s329 = scalar_select %p328, %s327, 7
        %s330 = scalar_lea.vmem %s0, %s329
        %s331 = smul.u32 4, %s25
        %s332 = smul.u32 4, %s25
        %v334 = vld [vmem:[%s330] sm:$0xf]
        %v335 = vld [vmem:[%s1] sm:$0xff]
        %v336 = vld [vmem:[%s1 + $0x8] sm:$0x3]
        %338 = vset.pattern.permute.xlu0 0
        %339 = vperm.xlu0 %338, %v335
        %v340 = vpop.permute.xlu0 %339
        %343 = vset.pattern.permute.xlu0 0
        %344 = vperm.xlu0 %343, %v336
        %v345 = vpop.permute.xlu0 %344
        %v348 = vperm.slane %v334, 0
        %v349 = vperm.slane %v334, 1
        %v350 = vperm.slane %v334, 2
        %v351 = vperm.slane %v334, 3
        %v356 = vmul.f32 %v340, %v348
        %v357 = vmul.f32 %v340, %v349
        %v358 = vmul.f32 %v340, %v350
        %v359 = vmul.f32 %v340, %v351
        %v360 = vmul.f32 %v345, %v348
        %v361 = vmul.f32 %v345, %v349
        %v362 = vmul.f32 %v345, %v350
        %v363 = vmul.f32 %v345, %v351
        %v364 = vld [vmem:[%s2] sm:$0xff]
        %v365 = vld [vmem:[%s2 + $0x8] sm:$0x3]
        %367 = vset.pattern.permute.xlu0 0
        %368 = vperm.xlu0 %367, %v364
        %v369 = vpop.permute.xlu0 %368
        %372 = vset.pattern.permute.xlu0 0
        %373 = vperm.xlu0 %372, %v365
        %v374 = vpop.permute.xlu0 %373
        %v376 = vadd.f32 %v356, %v369
        %v377 = vadd.f32 %v357, %v369
        %v378 = vadd.f32 %v358, %v369
        %v379 = vadd.f32 %v359, %v369
        %v380 = vadd.f32 %v360, %v374
        %v381 = vadd.f32 %v361, %v374
        %v382 = vadd.f32 %v362, %v374
        %v383 = vadd.f32 %v363, %v374
        %v384 = vmul.f32 %v376, 0.5
        %v385 = vmul.f32 %v377, 0.5
        %v386 = vmul.f32 %v378, 0.5
        %v387 = vmul.f32 %v379, 0.5
        %v388 = vmul.f32 %v380, 0.5
        %v389 = vmul.f32 %v381, 0.5
        %v390 = vmul.f32 %v382, 0.5
        %v391 = vmul.f32 %v383, 0.5
        %v392 = vtanh.pop %v384
        %v393 = vtanh.pop %v385
        %v394 = vtanh.pop %v386
        %v395 = vtanh.pop %v387
        %v396 = vtanh.pop %v388
        %v397 = vtanh.pop %v389
        %v398 = vtanh.pop %v390
        %v399 = vtanh.pop %v391
        %v400 = vadd.f32 %v392, 1.0
        %v401 = vadd.f32 %v393, 1.0
        %v402 = vadd.f32 %v394, 1.0
        %v403 = vadd.f32 %v395, 1.0
        %v404 = vadd.f32 %v396, 1.0
        %v405 = vadd.f32 %v397, 1.0
        %v406 = vadd.f32 %v398, 1.0
        %v407 = vadd.f32 %v399, 1.0
        %v408 = vmul.f32 %v384, %v400
        %v409 = vmul.f32 %v385, %v401
        %v410 = vmul.f32 %v386, %v402
        %v411 = vmul.f32 %v387, %v403
        %v412 = vmul.f32 %v388, %v404
        %v413 = vmul.f32 %v389, %v405
        %v414 = vmul.f32 %v390, %v406
        %v415 = vmul.f32 %v391, %v407
        %v416 = vld [vmem:[%s3] sm:$0xf]
        %v417 = vld [vmem:[%s3 + $0x4] sm:$0xf]
        %v418 = vld [vmem:[%s3 + $0x8] sm:$0xf]
        %v419 = vld [vmem:[%s3 + $0xc] sm:$0xf]
        %v420 = vld [vmem:[%s3 + $0x10] sm:$0xf]
        %v421 = vld [vmem:[%s3 + $0x14] sm:$0xf]
        %v422 = vld [vmem:[%s3 + $0x18] sm:$0xf]
        %v423 = vld [vmem:[%s3 + $0x1c] sm:$0xf]
        %v424 = vld [vmem:[%s3 + $0x20] sm:$0xf]
        %v425 = vld [vmem:[%s3 + $0x24] sm:$0xf]
        %v426 = vld [vmem:[%s3 + $0x28] sm:$0xf]
        %v427 = vld [vmem:[%s3 + $0x2c] sm:$0xf]
        %v428 = vld [vmem:[%s3 + $0x30] sm:$0x3]
        %v429 = vpack.c.bf16 %v412, %v408
        %v430 = vpack.c.bf16 %v413, %v409
        %v431 = vpack.c.bf16 %v414, %v410
        %v432 = vpack.c.bf16 %v415, %v411
        %v433 = vld [vmem:[%s4] sm:$0xff]
        %v434 = vld [vmem:[%s4 + $0x8] sm:$0xff]
        %v435 = vld [vmem:[%s4 + $0x10] sm:$0xff]
        %v436 = vld [vmem:[%s4 + $0x18] sm:$0xff]
        %v437 = vld [vmem:[%s4 + $0x20] sm:$0xff]
        %v438 = vld [vmem:[%s4 + $0x28] sm:$0xff]
        %v439 = vld [vmem:[%s4 + $0x30] sm:$0xff]
        %v440 = vld [vmem:[%s4 + $0x38] sm:$0xff]
        %v441 = vld [vmem:[%s4 + $0x40] sm:$0xff]
        %v442 = vld [vmem:[%s4 + $0x48] sm:$0xff]
        %v443 = vld [vmem:[%s4 + $0x50] sm:$0xff]
        %v444 = vld [vmem:[%s4 + $0x58] sm:$0xff]
        %v445 = vld [vmem:[%s4 + $0x60] sm:$0xf]
        %447 = vset.pattern.permute.xlu0 0
        %448 = vperm.xlu0 %447, %v433
        %v449 = vpop.permute.xlu0 %448
        %452 = vset.pattern.permute.xlu0 0
        %453 = vperm.xlu0 %452, %v434
        %v454 = vpop.permute.xlu0 %453
        %457 = vset.pattern.permute.xlu0 0
        %458 = vperm.xlu0 %457, %v435
        %v459 = vpop.permute.xlu0 %458
        %462 = vset.pattern.permute.xlu0 0
        %463 = vperm.xlu0 %462, %v436
        %v464 = vpop.permute.xlu0 %463
        %467 = vset.pattern.permute.xlu0 0
        %468 = vperm.xlu0 %467, %v437
        %v469 = vpop.permute.xlu0 %468
        %472 = vset.pattern.permute.xlu0 0
        %473 = vperm.xlu0 %472, %v438
        %v474 = vpop.permute.xlu0 %473
        %477 = vset.pattern.permute.xlu0 0
        %478 = vperm.xlu0 %477, %v439
        %v479 = vpop.permute.xlu0 %478
        %482 = vset.pattern.permute.xlu0 0
        %483 = vperm.xlu0 %482, %v440
        %v484 = vpop.permute.xlu0 %483
        %487 = vset.pattern.permute.xlu0 0
        %488 = vperm.xlu0 %487, %v441
        %v489 = vpop.permute.xlu0 %488
        %492 = vset.pattern.permute.xlu0 0
        %493 = vperm.xlu0 %492, %v442
        %v494 = vpop.permute.xlu0 %493
        %497 = vset.pattern.permute.xlu0 0
        %498 = vperm.xlu0 %497, %v443
        %v499 = vpop.permute.xlu0 %498
        %502 = vset.pattern.permute.xlu0 0
        %503 = vperm.xlu0 %502, %v444
        %v504 = vpop.permute.xlu0 %503
        %507 = vset.pattern.permute.xlu0 0
        %508 = vperm.xlu0 %507, %v445
        %v509 = vpop.permute.xlu0 %508
        %v524 = vunpack.c.l.b16 %v416
        %v525 = vunpack.c.l.b16 %v417
        %v526 = vunpack.c.l.b16 %v418
        %v527 = vunpack.c.l.b16 %v419
        %v528 = vunpack.c.l.b16 %v420
        %v529 = vunpack.c.l.b16 %v421
        %v530 = vunpack.c.l.b16 %v422
        %v531 = vunpack.c.l.b16 %v423
        %v532 = vunpack.c.l.b16 %v424
        %v533 = vunpack.c.l.b16 %v425
        %v534 = vunpack.c.l.b16 %v426
        %v535 = vunpack.c.l.b16 %v427
        %v536 = vunpack.c.l.b16 %v428
        %v537 = vpack.c.b16 %v525, %v524
        %v538 = vpack.c.b16 %v527, %v526
        %v539 = vpack.c.b16 %v529, %v528
        %v540 = vpack.c.b16 %v531, %v530
        %v541 = vpack.c.b16 %v533, %v532
        %v542 = vpack.c.b16 %v535, %v534
        %v543 = vpack.c.b16 %v536, %v536
        %vm544 = vcmask 80896
        %v546 = vsel %vm544, %v537, 0
        %v549 = vsel %vm544, %v538, 0
        %v552 = vsel %vm544, %v539, 0
        %v555 = vsel %vm544, %v540, 0
        %v558 = vsel %vm544, %v541, 0
        %v561 = vsel %vm544, %v542, 0
        %v564 = vsel %vm544, %v543, 0
        %vm566 = vcmask 1044480
        %v568 = vsel %vm566, %v429, 0
        %v571 = vsel %vm566, %v430, 0
        %v574 = vsel %vm566, %v431, 0
        %v577 = vsel %vm566, %v432, 0
        %579 = vmatpush.bf16.msra.mxu0 0
        %580 = vmatpush.bf16.msra.mxu0 0
        %581 = vmatpush.bf16.msra.mxu0 0
        %582 = vmatpush.bf16.msra.mxu0 0
        %583 = vmatpush.bf16.msra.mxu0 0
        %584 = vmatpush.bf16.msra.mxu0 0
        %585 = vmatpush.bf16.msra.mxu0 0
        %586 = vmatpush.bf16.msra.mxu0 %v568
        %587 = vmatmul.bf16.gmra.mxu0 %v546
        %v588 = vpop.f32.mrf.mxu0
        %v589 = vadd.f32 %v449, %v588
        %v590 = vpop.f32.mrf.mxu0
        %v591 = vadd.f32 %v454, %v590
        %592 = vmatmul.bf16.gmra.mxu0 %v549
        %v593 = vpop.f32.mrf.mxu0
        %v594 = vadd.f32 %v459, %v593
        %v595 = vpop.f32.mrf.mxu0
        %v596 = vadd.f32 %v464, %v595
        %597 = vmatmul.bf16.gmra.mxu0 %v552
        %v598 = vpop.f32.mrf.mxu0
        %v599 = vadd.f32 %v469, %v598
        %v600 = vpop.f32.mrf.mxu0
        %v601 = vadd.f32 %v474, %v600
        %602 = vmatmul.bf16.gmra.mxu0 %v555
        %v603 = vpop.f32.mrf.mxu0
        %v604 = vadd.f32 %v479, %v603
        %v605 = vpop.f32.mrf.mxu0
        %v606 = vadd.f32 %v484, %v605
        %607 = vmatmul.bf16.gmra.mxu0 %v558
        %v608 = vpop.f32.mrf.mxu0
        %v609 = vadd.f32 %v489, %v608
        %v610 = vpop.f32.mrf.mxu0
        %v611 = vadd.f32 %v494, %v610
        %612 = vmatmul.bf16.gmra.mxu0 %v561
        %v613 = vpop.f32.mrf.mxu0
        %v614 = vadd.f32 %v499, %v613
        %v615 = vpop.f32.mrf.mxu0
        %v616 = vadd.f32 %v504, %v615
        %617 = vmatmul.bf16.gmra.mxu0 %v564
        %v618 = vpop.f32.mrf.mxu0
        %v619 = vadd.f32 %v509, %v618
        %v620 = vpop.f32.mrf.mxu0
        %621 = vdwg.mxu0
        %622 = vmatpush.bf16.msra.mxu0 0
        %623 = vmatpush.bf16.msra.mxu0 0
        %624 = vmatpush.bf16.msra.mxu0 0
        %625 = vmatpush.bf16.msra.mxu0 0
        %626 = vmatpush.bf16.msra.mxu0 0
        %627 = vmatpush.bf16.msra.mxu0 0
        %628 = vmatpush.bf16.msra.mxu0 0
        %629 = vmatpush.bf16.msra.mxu0 %v571
        %630 = vmatmul.bf16.gmra.mxu0 %v546
        %v631 = vpop.f32.mrf.mxu0
        %v632 = vadd.f32 %v449, %v631
        %v633 = vpop.f32.mrf.mxu0
        %v634 = vadd.f32 %v454, %v633
        %635 = vmatmul.bf16.gmra.mxu0 %v549
        %v636 = vpop.f32.mrf.mxu0
        %v637 = vadd.f32 %v459, %v636
        %v638 = vpop.f32.mrf.mxu0
        %v639 = vadd.f32 %v464, %v638
        %640 = vmatmul.bf16.gmra.mxu0 %v552
        %v641 = vpop.f32.mrf.mxu0
        %v642 = vadd.f32 %v469, %v641
        %v643 = vpop.f32.mrf.mxu0
        %v644 = vadd.f32 %v474, %v643
        %645 = vmatmul.bf16.gmra.mxu0 %v555
        %v646 = vpop.f32.mrf.mxu0
        %v647 = vadd.f32 %v479, %v646
        %v648 = vpop.f32.mrf.mxu0
        %v649 = vadd.f32 %v484, %v648
        %650 = vmatmul.bf16.gmra.mxu0 %v558
        %v651 = vpop.f32.mrf.mxu0
        %v652 = vadd.f32 %v489, %v651
        %v653 = vpop.f32.mrf.mxu0
        %v654 = vadd.f32 %v494, %v653
        %655 = vmatmul.bf16.gmra.mxu0 %v561
        %v656 = vpop.f32.mrf.mxu0
        %v657 = vadd.f32 %v499, %v656
        %v658 = vpop.f32.mrf.mxu0
        %v659 = vadd.f32 %v504, %v658
        %660 = vmatmul.bf16.gmra.mxu0 %v564
        %v661 = vpop.f32.mrf.mxu0
        %v662 = vadd.f32 %v509, %v661
        %v663 = vpop.f32.mrf.mxu0
        %664 = vdwg.mxu0
        %665 = vmatpush.bf16.msra.mxu0 0
        %666 = vmatpush.bf16.msra.mxu0 0
        %667 = vmatpush.bf16.msra.mxu0 0
        %668 = vmatpush.bf16.msra.mxu0 0
        %669 = vmatpush.bf16.msra.mxu0 0
        %670 = vmatpush.bf16.msra.mxu0 0
        %671 = vmatpush.bf16.msra.mxu0 0
        %672 = vmatpush.bf16.msra.mxu0 %v574
        %673 = vmatmul.bf16.gmra.mxu0 %v546
        %v674 = vpop.f32.mrf.mxu0
        %v675 = vadd.f32 %v449, %v674
        %v676 = vpop.f32.mrf.mxu0
        %v677 = vadd.f32 %v454, %v676
        %678 = vmatmul.bf16.gmra.mxu0 %v549
        %v679 = vpop.f32.mrf.mxu0
        %v680 = vadd.f32 %v459, %v679
        %v681 = vpop.f32.mrf.mxu0
        %v682 = vadd.f32 %v464, %v681
        %683 = vmatmul.bf16.gmra.mxu0 %v552
        %v684 = vpop.f32.mrf.mxu0
        %v685 = vadd.f32 %v469, %v684
        %v686 = vpop.f32.mrf.mxu0
        %v687 = vadd.f32 %v474, %v686
        %688 = vmatmul.bf16.gmra.mxu0 %v555
        %v689 = vpop.f32.mrf.mxu0
        %v690 = vadd.f32 %v479, %v689
        %v691 = vpop.f32.mrf.mxu0
        %v692 = vadd.f32 %v484, %v691
        %693 = vmatmul.bf16.gmra.mxu0 %v558
        %v694 = vpop.f32.mrf.mxu0
        %v695 = vadd.f32 %v489, %v694
        %v696 = vpop.f32.mrf.mxu0
        %v697 = vadd.f32 %v494, %v696
        %698 = vmatmul.bf16.gmra.mxu0 %v561
        %v699 = vpop.f32.mrf.mxu0
        %v700 = vadd.f32 %v499, %v699
        %v701 = vpop.f32.mrf.mxu0
        %v702 = vadd.f32 %v504, %v701
        %703 = vmatmul.bf16.gmra.mxu0 %v564
        %v704 = vpop.f32.mrf.mxu0
        %v705 = vadd.f32 %v509, %v704
        %v706 = vpop.f32.mrf.mxu0
        %707 = vdwg.mxu0
        %708 = vmatpush.bf16.msra.mxu0 0
        %709 = vmatpush.bf16.msra.mxu0 0
        %710 = vmatpush.bf16.msra.mxu0 0
        %711 = vmatpush.bf16.msra.mxu0 0
        %712 = vmatpush.bf16.msra.mxu0 0
        %713 = vmatpush.bf16.msra.mxu0 0
        %714 = vmatpush.bf16.msra.mxu0 0
        %715 = vmatpush.bf16.msra.mxu0 %v577
        %716 = vmatmul.bf16.gmra.mxu0 %v546
        %v717 = vpop.f32.mrf.mxu0
        %v718 = vadd.f32 %v449, %v717
        %v719 = vpop.f32.mrf.mxu0
        %v720 = vadd.f32 %v454, %v719
        %721 = vmatmul.bf16.gmra.mxu0 %v549
        %v722 = vpop.f32.mrf.mxu0
        %v723 = vadd.f32 %v459, %v722
        %v724 = vpop.f32.mrf.mxu0
        %v725 = vadd.f32 %v464, %v724
        %726 = vmatmul.bf16.gmra.mxu0 %v552
        %v727 = vpop.f32.mrf.mxu0
        %v728 = vadd.f32 %v469, %v727
        %v729 = vpop.f32.mrf.mxu0
        %v730 = vadd.f32 %v474, %v729
        %731 = vmatmul.bf16.gmra.mxu0 %v555
        %v732 = vpop.f32.mrf.mxu0
        %v733 = vadd.f32 %v479, %v732
        %v734 = vpop.f32.mrf.mxu0
        %v735 = vadd.f32 %v484, %v734
        %736 = vmatmul.bf16.gmra.mxu0 %v558
        %v737 = vpop.f32.mrf.mxu0
        %v738 = vadd.f32 %v489, %v737
        %v739 = vpop.f32.mrf.mxu0
        %v740 = vadd.f32 %v494, %v739
        %741 = vmatmul.bf16.gmra.mxu0 %v561
        %v742 = vpop.f32.mrf.mxu0
        %v743 = vadd.f32 %v499, %v742
        %v744 = vpop.f32.mrf.mxu0
        %v745 = vadd.f32 %v504, %v744
        %746 = vmatmul.bf16.gmra.mxu0 %v564
        %v747 = vpop.f32.mrf.mxu0
        %v748 = vadd.f32 %v509, %v747
        %v749 = vpop.f32.mrf.mxu0
        %750 = vdwg.mxu0
        %v751 = vmul.f32 %v589, 0.5
        %v752 = vmul.f32 %v632, 0.5
        %v753 = vmul.f32 %v675, 0.5
        %v754 = vmul.f32 %v718, 0.5
        %v755 = vmul.f32 %v591, 0.5
        %v756 = vmul.f32 %v634, 0.5
        %v757 = vmul.f32 %v677, 0.5
        %v758 = vmul.f32 %v720, 0.5
        %v759 = vmul.f32 %v594, 0.5
        %v760 = vmul.f32 %v637, 0.5
        %v761 = vmul.f32 %v680, 0.5
        %v762 = vmul.f32 %v723, 0.5
        %v763 = vmul.f32 %v596, 0.5
        %v764 = vmul.f32 %v639, 0.5
        %v765 = vmul.f32 %v682, 0.5
        %v766 = vmul.f32 %v725, 0.5
        %v767 = vmul.f32 %v599, 0.5
        %v768 = vmul.f32 %v642, 0.5
        %v769 = vmul.f32 %v685, 0.5
        %v770 = vmul.f32 %v728, 0.5
        %v771 = vmul.f32 %v601, 0.5
        %v772 = vmul.f32 %v644, 0.5
        %v773 = vmul.f32 %v687, 0.5
        %v774 = vmul.f32 %v730, 0.5
        %v775 = vmul.f32 %v604, 0.5
        %v776 = vmul.f32 %v647, 0.5
        %v777 = vmul.f32 %v690, 0.5
        %v778 = vmul.f32 %v733, 0.5
        %v779 = vmul.f32 %v606, 0.5
        %v780 = vmul.f32 %v649, 0.5
        %v781 = vmul.f32 %v692, 0.5
        %v782 = vmul.f32 %v735, 0.5
        %v783 = vmul.f32 %v609, 0.5
        %v784 = vmul.f32 %v652, 0.5
        %v785 = vmul.f32 %v695, 0.5
        %v786 = vmul.f32 %v738, 0.5
        %v787 = vmul.f32 %v611, 0.5
        %v788 = vmul.f32 %v654, 0.5
        %v789 = vmul.f32 %v697, 0.5
        %v790 = vmul.f32 %v740, 0.5
        %v791 = vmul.f32 %v614, 0.5
        %v792 = vmul.f32 %v657, 0.5
        %v793 = vmul.f32 %v700, 0.5
        %v794 = vmul.f32 %v743, 0.5
        %v795 = vmul.f32 %v616, 0.5
        %v796 = vmul.f32 %v659, 0.5
        %v797 = vmul.f32 %v702, 0.5
        %v798 = vmul.f32 %v745, 0.5
        %v799 = vmul.f32 %v619, 0.5
        %v800 = vmul.f32 %v662, 0.5
        %v801 = vmul.f32 %v705, 0.5
        %v802 = vmul.f32 %v748, 0.5
        %v803 = vtanh.pop %v751
        %v804 = vtanh.pop %v752
        %v805 = vtanh.pop %v753
        %v806 = vtanh.pop %v754
        %v807 = vtanh.pop %v755
        %v808 = vtanh.pop %v756
        %v809 = vtanh.pop %v757
        %v810 = vtanh.pop %v758
        %v811 = vtanh.pop %v759
        %v812 = vtanh.pop %v760
        %v813 = vtanh.pop %v761
        %v814 = vtanh.pop %v762
        %v815 = vtanh.pop %v763
        %v816 = vtanh.pop %v764
        %v817 = vtanh.pop %v765
        %v818 = vtanh.pop %v766
        %v819 = vtanh.pop %v767
        %v820 = vtanh.pop %v768
        %v821 = vtanh.pop %v769
        %v822 = vtanh.pop %v770
        %v823 = vtanh.pop %v771
        %v824 = vtanh.pop %v772
        %v825 = vtanh.pop %v773
        %v826 = vtanh.pop %v774
        %v827 = vtanh.pop %v775
        %v828 = vtanh.pop %v776
        %v829 = vtanh.pop %v777
        %v830 = vtanh.pop %v778
        %v831 = vtanh.pop %v779
        %v832 = vtanh.pop %v780
        %v833 = vtanh.pop %v781
        %v834 = vtanh.pop %v782
        %v835 = vtanh.pop %v783
        %v836 = vtanh.pop %v784
        %v837 = vtanh.pop %v785
        %v838 = vtanh.pop %v786
        %v839 = vtanh.pop %v787
        %v840 = vtanh.pop %v788
        %v841 = vtanh.pop %v789
        %v842 = vtanh.pop %v790
        %v843 = vtanh.pop %v791
        %v844 = vtanh.pop %v792
        %v845 = vtanh.pop %v793
        %v846 = vtanh.pop %v794
        %v847 = vtanh.pop %v795
        %v848 = vtanh.pop %v796
        %v849 = vtanh.pop %v797
        %v850 = vtanh.pop %v798
        %v851 = vtanh.pop %v799
        %v852 = vtanh.pop %v800
        %v853 = vtanh.pop %v801
        %v854 = vtanh.pop %v802
        %v855 = vadd.f32 %v803, 1.0
        %v856 = vadd.f32 %v804, 1.0
        %v857 = vadd.f32 %v805, 1.0
        %v858 = vadd.f32 %v806, 1.0
        %v859 = vadd.f32 %v807, 1.0
        %v860 = vadd.f32 %v808, 1.0
        %v861 = vadd.f32 %v809, 1.0
        %v862 = vadd.f32 %v810, 1.0
        %v863 = vadd.f32 %v811, 1.0
        %v864 = vadd.f32 %v812, 1.0
        %v865 = vadd.f32 %v813, 1.0
        %v866 = vadd.f32 %v814, 1.0
        %v867 = vadd.f32 %v815, 1.0
        %v868 = vadd.f32 %v816, 1.0
        %v869 = vadd.f32 %v817, 1.0
        %v870 = vadd.f32 %v818, 1.0
        %v871 = vadd.f32 %v819, 1.0
        %v872 = vadd.f32 %v820, 1.0
        %v873 = vadd.f32 %v821, 1.0
        %v874 = vadd.f32 %v822, 1.0
        %v875 = vadd.f32 %v823, 1.0
        %v876 = vadd.f32 %v824, 1.0
        %v877 = vadd.f32 %v825, 1.0
        %v878 = vadd.f32 %v826, 1.0
        %v879 = vadd.f32 %v827, 1.0
        %v880 = vadd.f32 %v828, 1.0
        %v881 = vadd.f32 %v829, 1.0
        %v882 = vadd.f32 %v830, 1.0
        %v883 = vadd.f32 %v831, 1.0
        %v884 = vadd.f32 %v832, 1.0
        %v885 = vadd.f32 %v833, 1.0
        %v886 = vadd.f32 %v834, 1.0
        %v887 = vadd.f32 %v835, 1.0
        %v888 = vadd.f32 %v836, 1.0
        %v889 = vadd.f32 %v837, 1.0
        %v890 = vadd.f32 %v838, 1.0
        %v891 = vadd.f32 %v839, 1.0
        %v892 = vadd.f32 %v840, 1.0
        %v893 = vadd.f32 %v841, 1.0
        %v894 = vadd.f32 %v842, 1.0
        %v895 = vadd.f32 %v843, 1.0
        %v896 = vadd.f32 %v844, 1.0
        %v897 = vadd.f32 %v845, 1.0
        %v898 = vadd.f32 %v846, 1.0
        %v899 = vadd.f32 %v847, 1.0
        %v900 = vadd.f32 %v848, 1.0
        %v901 = vadd.f32 %v849, 1.0
        %v902 = vadd.f32 %v850, 1.0
        %v903 = vadd.f32 %v851, 1.0
        %v904 = vadd.f32 %v852, 1.0
        %v905 = vadd.f32 %v853, 1.0
        %v906 = vadd.f32 %v854, 1.0
        %v907 = vmul.f32 %v751, %v855
        %v908 = vmul.f32 %v752, %v856
        %v909 = vmul.f32 %v753, %v857
        %v910 = vmul.f32 %v754, %v858
        %v911 = vmul.f32 %v755, %v859
        %v912 = vmul.f32 %v756, %v860
        %v913 = vmul.f32 %v757, %v861
        %v914 = vmul.f32 %v758, %v862
        %v915 = vmul.f32 %v759, %v863
        %v916 = vmul.f32 %v760, %v864
        %v917 = vmul.f32 %v761, %v865
        %v918 = vmul.f32 %v762, %v866
        %v919 = vmul.f32 %v763, %v867
        %v920 = vmul.f32 %v764, %v868
        %v921 = vmul.f32 %v765, %v869
        %v922 = vmul.f32 %v766, %v870
        %v923 = vmul.f32 %v767, %v871
        %v924 = vmul.f32 %v768, %v872
        %v925 = vmul.f32 %v769, %v873
        %v926 = vmul.f32 %v770, %v874
        %v927 = vmul.f32 %v771, %v875
        %v928 = vmul.f32 %v772, %v876
        %v929 = vmul.f32 %v773, %v877
        %v930 = vmul.f32 %v774, %v878
        %v931 = vmul.f32 %v775, %v879
        %v932 = vmul.f32 %v776, %v880
        %v933 = vmul.f32 %v777, %v881
        %v934 = vmul.f32 %v778, %v882
        %v935 = vmul.f32 %v779, %v883
        %v936 = vmul.f32 %v780, %v884
        %v937 = vmul.f32 %v781, %v885
        %v938 = vmul.f32 %v782, %v886
        %v939 = vmul.f32 %v783, %v887
        %v940 = vmul.f32 %v784, %v888
        %v941 = vmul.f32 %v785, %v889
        %v942 = vmul.f32 %v786, %v890
        %v943 = vmul.f32 %v787, %v891
        %v944 = vmul.f32 %v788, %v892
        %v945 = vmul.f32 %v789, %v893
        %v946 = vmul.f32 %v790, %v894
        %v947 = vmul.f32 %v791, %v895
        %v948 = vmul.f32 %v792, %v896
        %v949 = vmul.f32 %v793, %v897
        %v950 = vmul.f32 %v794, %v898
        %v951 = vmul.f32 %v795, %v899
        %v952 = vmul.f32 %v796, %v900
        %v953 = vmul.f32 %v797, %v901
        %v954 = vmul.f32 %v798, %v902
        %v955 = vmul.f32 %v799, %v903
        %v956 = vmul.f32 %v800, %v904
        %v957 = vmul.f32 %v801, %v905
        %v958 = vmul.f32 %v802, %v906
        %v959 = vld [vmem:[%s5] sm:$0xf]
        %v960 = vld [vmem:[%s5 + $0x4] sm:$0x1]
        %v961 = vpack.c.bf16 %v911, %v907
        %v962 = vpack.c.bf16 %v912, %v908
        %v963 = vpack.c.bf16 %v913, %v909
        %v964 = vpack.c.bf16 %v914, %v910
        %v965 = vpack.c.bf16 %v919, %v915
        %v966 = vpack.c.bf16 %v920, %v916
        %v967 = vpack.c.bf16 %v921, %v917
        %v968 = vpack.c.bf16 %v922, %v918
        %v969 = vpack.c.bf16 %v927, %v923
        %v970 = vpack.c.bf16 %v928, %v924
        %v971 = vpack.c.bf16 %v929, %v925
        %v972 = vpack.c.bf16 %v930, %v926
        %v973 = vpack.c.bf16 %v935, %v931
        %v974 = vpack.c.bf16 %v936, %v932
        %v975 = vpack.c.bf16 %v937, %v933
        %v976 = vpack.c.bf16 %v938, %v934
        %v977 = vpack.c.bf16 %v943, %v939
        %v978 = vpack.c.bf16 %v944, %v940
        %v979 = vpack.c.bf16 %v945, %v941
        %v980 = vpack.c.bf16 %v946, %v942
        %v981 = vpack.c.bf16 %v951, %v947
        %v982 = vpack.c.bf16 %v952, %v948
        %v983 = vpack.c.bf16 %v953, %v949
        %v984 = vpack.c.bf16 %v954, %v950
        %v985 = vpack.c.bf16 %v955, %v955
        %v986 = vpack.c.bf16 %v956, %v956
        %v987 = vpack.c.bf16 %v957, %v957
        %v988 = vpack.c.bf16 %v958, %v958
        %v989 = vld [vmem:[%s6] sm:$0xff]
        %v990 = vld [vmem:[%s6 + $0x8] sm:$0x3]
        %992 = vset.pattern.permute.xlu0 0
        %993 = vperm.xlu0 %992, %v989
        %v994 = vpop.permute.xlu0 %993
        %997 = vset.pattern.permute.xlu0 0
        %998 = vperm.xlu0 %997, %v990
        %v999 = vpop.permute.xlu0 %998
        %v1003 = vunpack.c.l.b16 %v959
        %v1004 = vunpack.c.l.b16 %v960
        %v1005 = vpack.c.b16 %v1004, %v1003
        %vm1006 = vcmask 818176
        %v1008 = vsel %vm1006, %v1005, 0
        %vm1010 = vcmask 1041408
        %v1012 = vsel %vm1010, %v985, 0
        %v1015 = vsel %vm1010, %v986, 0
        %v1018 = vsel %vm1010, %v987, 0
        %v1021 = vsel %vm1010, %v988, 0
        %1023 = vmatpush.bf16.msra.mxu0 0
        %1024 = vmatpush.bf16.msra.mxu0 %v1012
        %1025 = vmatpush.bf16.msra.mxu0 %v981
        %1026 = vmatpush.bf16.msra.mxu0 %v977
        %1027 = vmatpush.bf16.msra.mxu0 %v973
        %1028 = vmatpush.bf16.msra.mxu0 %v969
        %1029 = vmatpush.bf16.msra.mxu0 %v965
        %1030 = vmatpush.bf16.msra.mxu0 %v961
        %1031 = vmatmul.bf16.gmra.mxu0 %v1008
        %v1032 = vpop.f32.mrf.mxu0
        %v1033 = vadd.f32 %v994, %v1032
        %v1034 = vpop.f32.mrf.mxu0
        %v1035 = vadd.f32 %v999, %v1034
        %1036 = vdwg.mxu0
        %1037 = vmatpush.bf16.msra.mxu0 0
        %1038 = vmatpush.bf16.msra.mxu0 %v1015
        %1039 = vmatpush.bf16.msra.mxu0 %v982
        %1040 = vmatpush.bf16.msra.mxu0 %v978
        %1041 = vmatpush.bf16.msra.mxu0 %v974
        %1042 = vmatpush.bf16.msra.mxu0 %v970
        %1043 = vmatpush.bf16.msra.mxu0 %v966
        %1044 = vmatpush.bf16.msra.mxu0 %v962
        %1045 = vmatmul.bf16.gmra.mxu0 %v1008
        %v1046 = vpop.f32.mrf.mxu0
        %v1047 = vadd.f32 %v994, %v1046
        %v1048 = vpop.f32.mrf.mxu0
        %v1049 = vadd.f32 %v999, %v1048
        %1050 = vdwg.mxu0
        %1051 = vmatpush.bf16.msra.mxu0 0
        %1052 = vmatpush.bf16.msra.mxu0 %v1018
        %1053 = vmatpush.bf16.msra.mxu0 %v983
        %1054 = vmatpush.bf16.msra.mxu0 %v979
        %1055 = vmatpush.bf16.msra.mxu0 %v975
        %1056 = vmatpush.bf16.msra.mxu0 %v971
        %1057 = vmatpush.bf16.msra.mxu0 %v967
        %1058 = vmatpush.bf16.msra.mxu0 %v963
        %1059 = vmatmul.bf16.gmra.mxu0 %v1008
        %v1060 = vpop.f32.mrf.mxu0
        %v1061 = vadd.f32 %v994, %v1060
        %v1062 = vpop.f32.mrf.mxu0
        %v1063 = vadd.f32 %v999, %v1062
        %1064 = vdwg.mxu0
        %1065 = vmatpush.bf16.msra.mxu0 0
        %1066 = vmatpush.bf16.msra.mxu0 %v1021
        %1067 = vmatpush.bf16.msra.mxu0 %v984
        %1068 = vmatpush.bf16.msra.mxu0 %v980
        %1069 = vmatpush.bf16.msra.mxu0 %v976
        %1070 = vmatpush.bf16.msra.mxu0 %v972
        %1071 = vmatpush.bf16.msra.mxu0 %v968
        %1072 = vmatpush.bf16.msra.mxu0 %v964
        %1073 = vmatmul.bf16.gmra.mxu0 %v1008
        %v1074 = vpop.f32.mrf.mxu0
        %v1075 = vadd.f32 %v994, %v1074
        %v1076 = vpop.f32.mrf.mxu0
        %v1077 = vadd.f32 %v999, %v1076
        %1078 = vdwg.mxu0
        %v1079 = vmax.f32 %v1033, 0.0
        %v1080 = vmax.f32 %v1047, 0.0
        %v1081 = vmax.f32 %v1061, 0.0
        %v1082 = vmax.f32 %v1075, 0.0
        %v1083 = vmax.f32 %v1035, 0.0
        %v1084 = vmax.f32 %v1049, 0.0
        %v1085 = vmax.f32 %v1063, 0.0
        %v1086 = vmax.f32 %v1077, 0.0
        %v1087 = vld [vmem:[%s7] sm:$0xff]
        %v1088 = vld [vmem:[%s7 + $0x8] sm:$0x3]
        %1090 = vset.pattern.permute.xlu0 0
        %1091 = vperm.xlu0 %1090, %v1087
        %v1092 = vpop.permute.xlu0 %1091
        %1095 = vset.pattern.permute.xlu0 0
        %1096 = vperm.xlu0 %1095, %v1088
        %v1097 = vpop.permute.xlu0 %1096
        %v1099 = vmul.f32 %v1092, %v1079
        %v1100 = vmul.f32 %v1092, %v1080
        %v1101 = vmul.f32 %v1092, %v1081
        %v1102 = vmul.f32 %v1092, %v1082
        %v1103 = vmul.f32 %v1097, %v1083
        %v1104 = vmul.f32 %v1097, %v1084
        %v1105 = vmul.f32 %v1097, %v1085
        %v1106 = vmul.f32 %v1097, %v1086
        %v1107 = vsel %vm1010, %v1103, 0.0
        %v1108 = vadd.f32 %v1099, %v1107
        %v1109 = vrot.slane %v1108, 4
        %v1110 = vadd.f32 %v1108, %v1109
        %v1111 = vrot.slane %v1110, 2
        %v1112 = vadd.f32 %v1110, %v1111
        %v1113 = vrot.slane %v1112, 1
        %v1114 = vadd.f32 %v1112, %v1113
        %v1115 = vsel %vm1010, %v1104, 0.0
        %v1116 = vadd.f32 %v1100, %v1115
        %v1117 = vrot.slane %v1116, 4
        %v1118 = vadd.f32 %v1116, %v1117
        %v1119 = vrot.slane %v1118, 2
        %v1120 = vadd.f32 %v1118, %v1119
        %v1121 = vrot.slane %v1120, 1
        %v1122 = vadd.f32 %v1120, %v1121
        %v1123 = vsel %vm1010, %v1105, 0.0
        %v1124 = vadd.f32 %v1101, %v1123
        %v1125 = vrot.slane %v1124, 4
        %v1126 = vadd.f32 %v1124, %v1125
        %v1127 = vrot.slane %v1126, 2
        %v1128 = vadd.f32 %v1126, %v1127
        %v1129 = vrot.slane %v1128, 1
        %v1130 = vadd.f32 %v1128, %v1129
        %v1131 = vsel %vm1010, %v1106, 0.0
        %v1132 = vadd.f32 %v1102, %v1131
        %v1133 = vrot.slane %v1132, 4
        %v1134 = vadd.f32 %v1132, %v1133
        %v1135 = vrot.slane %v1134, 2
        %v1136 = vadd.f32 %v1134, %v1135
        %v1137 = vrot.slane %v1136, 1
        %v1138 = vadd.f32 %v1136, %v1137
        %v1139 = vld [vmem:[#allocation2] sm:$0x1]
        %1141 = vset.pattern.permute.xlu0 0
        %1142 = vperm.xlu0 %1141, %v1139
        %v1143 = vpop.permute.xlu0 %1142
        %v1145 = vperm.slane %v1143, 0
        %v1146 = vadd.f32 %v1114, %v1145
        %v1147 = vadd.f32 %v1122, %v1145
        %v1148 = vadd.f32 %v1130, %v1145
        %v1149 = vadd.f32 %v1138, %v1145
        %v1154 = vrot.slane %v1147, 7
        %v1155 = vrot.slane %v1148, 6
        %v1156 = vrot.slane %v1149, 5
        %vm1157 = vcmask 1040384
        %v1158 = vsel %vm1157, %v1146, %v1154
        %vm1159 = vcmask 1042434
        %v1160 = vsel %vm1159, %v1155, %v1156
        %v1161 = vsel %vm1010, %v1158, %v1160
        %v1163 = vlaneseq
        %vm1164 = vcmp.ge.s32.totalorder %v1163, 0
        %vm1165 = vcmp.lt.s32.totalorder %v1163, 512
        %vm1166 = vmand %vm1164, %vm1165
        %1167 = vst.msk [vmem:[%s326] sm:$0xf] %vm1166, %v1161
        %s1168 = sand.u32 %s227, 1
        %s1169 = scalar_lea.sflag [#allocation4], %s1168
        %s1170 = sand.u32 %s227, 1
        %s1171 = smul.addr %s1170, 4
        %s1172 = scalar_lea.vmem [#allocation3], %s1171
        // Predicated region
        $region57: #{tpu_custom_call.1} parent=55 // pred_check
          %p1173 = pneg %p237
        $region58: #{tpu_custom_call.1} parent=55 // pred_check_branch
          %1175 = sbr.rel (%p1173) target = $region60
        $region59: #{tpu_custom_call.1} parent=55 // pred_region
          %s1176 = smul.u32 4, %s25
          %1178 = vsyncadd %s1169, 0
          %s1179 = scalar_lea.hbm %s9, %s1176
          %s1181 = sshll.u32 %s1172, 4
          %s1182 = int_to_ptr.vmem [resolvable:$true] %s1181
          %s1183 = sshll.u32 %s1179, 4
          %s1184 = int_to_ptr.hbm [resolvable:$true] %s1183
          %1186 = dma.vmem_to_hbm [thread:$0]  %s1182, 64, %s1184, %s1169
        $region60: #{tpu_custom_call.1} parent=55 // pred_fallthru
          _
      $region56: #{tpu_custom_call.1} parent=5 // pred_fallthru
        _
      %p1187 = scmp.le.s32.totalorder 2, %s20
      // Predicated region
      $region61: #{tpu_custom_call.1} parent=5 // pred_check
        %p1188 = pneg %p1187
      $region62: #{tpu_custom_call.1} parent=5 // pred_check_branch
        %1190 = sbr.rel (%p1188) target = $region64
      $region63: #{tpu_custom_call.1} parent=5 // pred_region
        %s1191 = ssub.s32 %s20, 2
        // Predicated region
        $region65: #{tpu_custom_call.1} parent=63 // pred_check
          %p1192 = pneg %p243
        $region66: #{tpu_custom_call.1} parent=63 // pred_check_branch
          %1194 = sbr.rel (%p1192) target = $region68
        $region67: #{tpu_custom_call.1} parent=63 // pred_region
          %s1195 = sand.u32 %s228, 1
          %s1196 = scalar_lea.sflag [#allocation4], %s1195
          %s1197 = sand.u32 %s228, 1
          %s1198 = smul.addr %s1197, 4
          %s1199 = scalar_lea.vmem [#allocation3], %s1198
          %1201 = dma.done %s1196, 64
        $region68: #{tpu_custom_call.1} parent=63 // pred_fallthru
          _
      $region64: #{tpu_custom_call.1} parent=5 // pred_fallthru
        _
    $region6: #{tpu_custom_call.1} parent=1 // loop_footer
      %s24 = sadd.s32 1, %s20
    $region7: #{tpu_custom_call.1} parent=1 // loop_footer_branch
      %19 = sbr.rel target = $region3
    $region8: #{tpu_custom_call.1} parent=1 // loop_exit
      _
    %1202 = vsyncpa [#allocation4], 1
    %s1203 = scalar_lea.sflag [#allocation4], 1
    %1204 = vsyncpa %s1203, 1

</llo_original>
